<compile_context>
chip_gen: v7x
topology: tpu7x:2x2x1
jax: 0.10.0
libtpu: 0.0.40
codegen_flags: <defaults>
</compile_context>

<pallas_src>
import math
import numpy as np
import jax
import jax.numpy as jnp
from jax.experimental import pallas as pl
from jax.experimental.pallas import tpu as pltpu

NUM_E = 3          # number of experts
R = 4              # LoRA rank
LORA_ALPHA = 8.0
BN_EPS = 1e-5


def mlora_kernel(p_ref, q_ref, wcat_ref, bcat_ref,
                 w1_ref, b1_ref, w2_ref, b2_ref, o_ref):
    # p_ref   : (CK, thw)           bf16  im2col patches tile (feature-major, lane = spatial)
    # q_ref   : (Cout, thw)         bf16  query tile (feature-major)
    # wcat_ref: ((1+E)*Cout, CK)    bf16  [W0 ; 2*s*W_1 ; ... ; 2*s*W_E]
    # bcat_ref: ((1+E)*Cout, 1)     f32   [b0 ; 2*b0 ; ... ; 2*b0]
    # w1_ref  : (E*Cout, Cout)      bf16  fused gate conv-1 weights (BN1 scale folded in)
    # b1_ref  : (E*Cout, 1)         f32   BN1 shift
    # w2_ref  : (E*Cout, E*Cout)    bf16  block-diag gate conv-2 weights (BN2 scale folded in)
    # b2_ref  : (E*Cout, 1)         f32   BN2 shift
    # o_ref   : (Cout, thw)         f32   output tile (already NCHW-ordered: n, cout, ho*wo)
    cout = o_ref.shape[0]

    # Fused base + expert convolutions: one wide-N MXU matmul, f32 accumulation.
    z = jnp.dot(wcat_ref[...], p_ref[...],
                preferred_element_type=jnp.float32) + bcat_ref[...]

    # Fused gate path: 1x1 conv -> BN1 (folded) -> ReLU -> 1x1 conv (block-diag)
    # -> Dropout2d (identity in eval) -> BN2 (folded) -> Sigmoid.  Element-wise
    # math kept in f32 (v5e has no bf16 VPU/EUP path; EUP sigmoid is not the
    # bottleneck on v6e/v7x either).
    h = jnp.dot(w1_ref[...], q_ref[...],
                preferred_element_type=jnp.float32) + b1_ref[...]
    h = jnp.maximum(h, 0.0)
    h = jnp.dot(w2_ref[...], h.astype(w2_ref.dtype),
                preferred_element_type=jnp.float32) + b2_ref[...]
    g = jax.nn.sigmoid(h)                                   # (E*Cout, thw)

    acc = z[:cout]                                          # base conv
    for i in range(NUM_E):                                  # acc += g_i * (2 * expert_i)
        acc = acc + g[i * cout:(i + 1) * cout] * z[(i + 1) * cout:(i + 2) * cout]
    o_ref[...] = acc.astype(o_ref.dtype)


def mlora_conv2d_forward(x, query, params, *, thw_max=2048):
    """x: (N, Cin, H, W) NCHW; query: (N, Cout, Ho, Wo) NCHW. Returns (N, Cout, Ho, Wo) f32."""
    N, Cin, H, W = x.shape
    Cout, _, K, _ = params["w_conv"].shape
    stride, pad = params["stride"], params["pad"]
    Ho = (H + 2 * pad - K) // stride + 1
    Wo = (W + 2 * pad - K) // stride + 1
    HW = Ho * Wo
    CK = Cin * K * K

    # Spatial (lane) tile: multiple of 128, capped.  1024-2048 is the sweet
    # spot on v5e/v6e (128 MiB VMEM); the small channel counts here keep even
    # 2048 well inside v7x's 64 MiB — lower thw_max there for very large CK.
    assert thw_max % 128 == 0
    thw = min(-(-HW // 128) * 128, thw_max)
    n_hw = pl.cdiv(HW, thw)
    HWp = n_hw * thw

    # --- glue: im2col as ONE XLA op, already in (N, CK, Ho*Wo) layout with
    # channel order (ci, kh, kw) matching w.reshape(Cout, CK); bf16 output. ---
    patches = jax.lax.conv_general_dilated_patches(
        x.astype(jnp.bfloat16), (K, K), (stride, stride),
        ((pad, pad), (pad, pad)),
        dimension_numbers=("NCHW", "OIHW", "NCHW"))          # (N, CK, Ho, Wo)
    patches = patches.reshape(N, CK, HW)
    q3 = query.reshape(N, Cout, HW).astype(jnp.bfloat16)
    if HWp != HW:                                            # pad lane axis to tile multiple
        patches = jnp.pad(patches, ((0, 0), (0, 0), (0, HWp - HW)))
        q3 = jnp.pad(q3, ((0, 0), (0, 0), (0, HWp - HW)))

    # --- glue: parameter folding (PyTorch weight layouts, eval-mode BN) ---
    w0 = params["w_conv"].reshape(Cout, CK)
    b0 = params["b_conv"]
    scaling = params["lora_alpha"] / params["r"]
    wexp = [2.0 * scaling *                                   # LoRA delta kept f32 until cast
            (params["lora_B"][i] @ params["lora_A"][i])
            .reshape(Cout, Cin, K, K).reshape(Cout, CK)
            for i in range(NUM_E)]
    wcat = jnp.concatenate([w0] + wexp, axis=0).astype(jnp.bfloat16)          # ((1+E)*Cout, CK)
    bcat = jnp.concatenate([b0] + [2.0 * b0] * NUM_E, axis=0)[:, None].astype(jnp.float32)

    s1 = params["bn1_gamma"] / jnp.sqrt(params["bn1_var"] + BN_EPS)           # (E, Cout)
    t1 = params["bn1_beta"] - params["bn1_mean"] * s1
    s2 = params["bn2_gamma"] / jnp.sqrt(params["bn2_var"] + BN_EPS)
    t2 = params["bn2_beta"] - params["bn2_mean"] * s2

    w1cat = jnp.concatenate(
        [s1[i][:, None] * params["gate_w1"][i] for i in range(NUM_E)], axis=0
    ).astype(jnp.bfloat16)                                                    # (E*Cout, Cout)
    b1cat = t1.reshape(NUM_E * Cout, 1).astype(jnp.float32)

    EC = NUM_E * Cout
    w2bd = jnp.zeros((EC, EC), jnp.float32)
    for i in range(NUM_E):                                   # block-diagonal gate conv-2
        w2bd = w2bd.at[i * Cout:(i + 1) * Cout, i * Cout:(i + 1) * Cout].set(
            s2[i][:, None] * params["gate_w2"][i])
    w2bd = w2bd.astype(jnp.bfloat16)
    b2cat = t2.reshape(EC, 1).astype(jnp.float32)

    Ecat = (1 + NUM_E) * Cout

    # --- VMEM budget (derived, not hard-coded) and cost estimate ---
    weight_bytes = (Ecat * CK + EC * Cout + EC * EC) * 2 + (Ecat + 2 * EC) * 4
    vmem_est = (2 * (CK + Cout) * thw * 2        # double-buffered bf16 input tiles
                + 2 * Cout * thw * 4             # double-buffered f32 output tile
                + 2 * weight_bytes               # constant weight blocks (2 pipeline buffers)
                + (Ecat + 2 * EC) * thw * 4)     # live f32 intermediates
    vmem_limit = int(min(max(2 * vmem_est, 32 * 1024 * 1024), 64 * 1024 * 1024))

    total_cols = N * HWp
    cost = pl.CostEstimate(
        flops=int(2 * (Ecat * CK + EC * Cout + EC * EC) * total_cols
                  + 3 * NUM_E * Cout * total_cols),
        transcendentals=int(EC * total_cols),
        bytes_accessed=int(patches.size * 2 + q3.size * 2
                           + N * Cout * HWp * 4 + weight_bytes))

    out3 = pl.pallas_call(
        mlora_kernel,
        out_shape=jax.ShapeDtypeStruct((N, Cout, HWp), jnp.float32),
        grid=(N, n_hw),
        in_specs=[
            pl.BlockSpec((None, CK, thw), lambda n, j: (n, 0, j)),    # patches (feature-major)
            pl.BlockSpec((None, Cout, thw), lambda n, j: (n, 0, j)),  # query (feature-major)
            pl.BlockSpec((Ecat, CK), lambda n, j: (0, 0)),            # fused conv weights
            pl.BlockSpec((Ecat, 1), lambda n, j: (0, 0)),             # fused conv bias
            pl.BlockSpec((EC, Cout), lambda n, j: (0, 0)),            # fused gate w1
            pl.BlockSpec((EC, 1), lambda n, j: (0, 0)),               # BN1 shift
            pl.BlockSpec((EC, EC), lambda n, j: (0, 0)),              # block-diag gate w2
            pl.BlockSpec((EC, 1), lambda n, j: (0, 0)),               # BN2 shift
        ],
        out_specs=pl.BlockSpec((None, Cout, thw), lambda n, j: (n, 0, j)),
        compiler_params=pltpu.CompilerParams(
            dimension_semantics=("parallel", "parallel"),
            vmem_limit_bytes=vmem_limit),
        cost_estimate=cost,
    )(patches, q3, wcat, bcat, w1cat, b1cat, w2bd, b2cat)

    if HWp != HW:                                            # drop padded lanes (outside output)
        out3 = out3[:, :, :HW]
    return out3.reshape(N, Cout, Ho, Wo)                     # contiguous reshape, no transpose


def ref_forward(x, query, params):
    """Pure-JAX f32 reference mirroring the PyTorch forward (eval mode)."""
    stride, pad = params["stride"], params["pad"]
    Cout, Cin, K, _ = params["w_conv"].shape

    def conv(xx, ww, bb):
        out = jax.lax.conv_general_dilated(
            xx, ww, (stride, stride), ((pad, pad), (pad, pad)),
            dimension_numbers=("NCHW", "OIHW", "NCHW"))
        return out + bb[None, :, None, None]

    res = conv(x, params["w_conv"], params["b_conv"])
    scaling = params["lora_alpha"] / params["r"]
    for i in range(NUM_E):
        wi = (params["lora_B"][i] @ params["lora_A"][i]).reshape(Cout, Cin, K, K) * scaling
        e = conv(x, wi, params["b_conv"])
        h = jnp.einsum("nchw,oc->nohw", query, params["gate_w1"][i])
        s1 = params["bn1_gamma"][i] / jnp.sqrt(params["bn1_var"][i] + BN_EPS)
        h = h * s1[None, :, None, None] + (params["bn1_beta"][i] - params["bn1_mean"][i] * s1)[None, :, None, None]
        h = jnp.maximum(h, 0.0)
        h = jnp.einsum("nchw,oc->nohw", h, params["gate_w2"][i])
        s2 = params["bn2_gamma"][i] / jnp.sqrt(params["bn2_var"][i] + BN_EPS)
        h = h * s2[None, :, None, None] + (params["bn2_beta"][i] - params["bn2_mean"][i] * s2)[None, :, None, None]
        res = res + 2.0 * jax.nn.sigmoid(h) * e
    return res


if __name__ == "__main__":
    # Small, deterministic configuration.
    N, Cin, H, W = 2, 4, 16, 16
    Cout, K, STRIDE, PAD = 8, 3, 1, 1
    Ho = (H + 2 * PAD - K) // STRIDE + 1
    Wo = (W + 2 * PAD - K) // STRIDE + 1

    key = jax.random.PRNGKey(0)
    ks = jax.random.split(key, 16)

    # kaiming_uniform(a=sqrt(5)) bound for lora_A (fan_in = Cin*K)
    bound_a = 1.0 / math.sqrt(Cin * K)
    params = {
        "stride": STRIDE,
        "pad": PAD,
        "r": R,
        "lora_alpha": LORA_ALPHA,
        "w_conv": 0.1 * jax.random.normal(ks[0], (Cout, Cin, K, K), jnp.float32),
        "b_conv": 0.1 * jax.random.normal(ks[1], (Cout,), jnp.float32),
        "lora_A": jax.random.uniform(ks[2], (NUM_E, K * R, Cin * K), jnp.float32,
                                     minval=-bound_a, maxval=bound_a),
        # NOTE: PyTorch init sets lora_B = 0 (experts would be identically zero);
        # use small random values here so the expert path is actually exercised.
        "lora_B": 0.1 * jax.random.normal(ks[3], (NUM_E, Cout * K, K * R), jnp.float32),
        "gate_w1": 0.2 * jax.random.normal(ks[4], (NUM_E, Cout, Cout), jnp.float32),
        "gate_w2": 0.2 * jax.random.normal(ks[5], (NUM_E, Cout, Cout), jnp.float32),
        # BatchNorm (eval mode) parameters / running stats
        "bn1_gamma": jax.random.uniform(ks[6], (NUM_E, Cout), jnp.float32, 0.5, 1.5),
        "bn1_beta": 0.1 * jax.random.normal(ks[7], (NUM_E, Cout), jnp.float32),
        "bn1_mean": 0.1 * jax.random.normal(ks[8], (NUM_E, Cout), jnp.float32),
        "bn1_var": jax.random.uniform(ks[9], (NUM_E, Cout), jnp.float32, 0.5, 1.5),
        "bn2_gamma": jax.random.uniform(ks[10], (NUM_E, Cout), jnp.float32, 0.5, 1.5),
        "bn2_beta": 0.1 * jax.random.normal(ks[11], (NUM_E, Cout), jnp.float32),
        "bn2_mean": 0.1 * jax.random.normal(ks[12], (NUM_E, Cout), jnp.float32),
        "bn2_var": jax.random.uniform(ks[13], (NUM_E, Cout), jnp.float32, 0.5, 1.5),
    }

    x = jax.random.normal(ks[14], (N, Cin, H, W), jnp.float32)
    # self.query is set via get_query(); it must match the conv-output shape.
    query = jax.random.normal(ks[15], (N, Cout, Ho, Wo), jnp.float32)

    out = mlora_conv2d_forward(x, query, params)
    out = jax.block_until_ready(out)

    ref = jax.block_until_ready(ref_forward(x, query, params))
    # bf16 matmul operands (f32 accumulation) vs. the f32 reference: expected
    # element-wise error is a few 1e-3; 3e-2 tolerance leaves margin.
    np.testing.assert_allclose(np.asarray(out), np.asarray(ref), rtol=3e-2, atol=3e-2)

    print("KERNEL_OK")
</pallas_src>

<mosaic_0001>
module attributes {stable_mosaic.version = 11 : i64} {
  func.func @mlora_kernel(%arg0: i32, %arg1: i32, %arg2: memref<1x36x256xbf16, #tpu.memory_space<vmem>>, %arg3: memref<1x8x256xbf16, #tpu.memory_space<vmem>>, %arg4: memref<32x36xbf16, #tpu.memory_space<vmem>>, %arg5: memref<32x1xf32, #tpu.memory_space<vmem>>, %arg6: memref<24x8xbf16, #tpu.memory_space<vmem>>, %arg7: memref<24x1xf32, #tpu.memory_space<vmem>>, %arg8: memref<24x24xbf16, #tpu.memory_space<vmem>>, %arg9: memref<24x1xf32, #tpu.memory_space<vmem>>, %arg10: memref<1x8x256xf32, #tpu.memory_space<vmem>>) attributes {dimension_semantics = [#tpu.dimension_semantics<parallel>, #tpu.dimension_semantics<parallel>], iteration_bounds = array<i64: 2, 1>, scalar_prefetch = 0 : i64, scratch_operands = 0 : i64, tpu.core_type = #tpu.core_type<tc>, window_params = [{transform_indices = @transform_0, window_bounds = array<i64: 1, 36, 256>}, {transform_indices = @transform_1, window_bounds = array<i64: 1, 8, 256>}, {pipeline_mode = #tpu.pipeline_mode<synchronous>, transform_indices = @transform_2, window_bounds = array<i64: 32, 36>}, {pipeline_mode = #tpu.pipeline_mode<synchronous>, transform_indices = @transform_3, window_bounds = array<i64: 32, 1>}, {pipeline_mode = #tpu.pipeline_mode<synchronous>, transform_indices = @transform_4, window_bounds = array<i64: 24, 8>}, {pipeline_mode = #tpu.pipeline_mode<synchronous>, transform_indices = @transform_5, window_bounds = array<i64: 24, 1>}, {pipeline_mode = #tpu.pipeline_mode<synchronous>, transform_indices = @transform_6, window_bounds = array<i64: 24, 24>}, {pipeline_mode = #tpu.pipeline_mode<synchronous>, transform_indices = @transform_7, window_bounds = array<i64: 24, 1>}, {transform_indices = @transform_8, window_bounds = array<i64: 1, 8, 256>}]} {
    %c0 = arith.constant 0 : index
    %c0_0 = arith.constant 0 : index
    %0 = vector.load %arg4[%c0, %c0_0] : memref<32x36xbf16, #tpu.memory_space<vmem>>, vector<32x36xbf16>
    %c0_1 = arith.constant 0 : index
    %c0_2 = arith.constant 0 : index
    %c0_3 = arith.constant 0 : index
    %1 = vector.load %arg2[%c0_1, %c0_2, %c0_3] : memref<1x36x256xbf16, #tpu.memory_space<vmem>>, vector<1x36x256xbf16>
    %2 = vector.shape_cast %1 : vector<1x36x256xbf16> to vector<36x256xbf16>
    %cst = arith.constant dense<0.000000e+00> : vector<32x256xf32>
    %3 = tpu.matmul %0, %2, %cst {dimension_numbers = #tpu.dot_dimension_numbers<[1], [0], [0], [1], [0, 0, 1, 1], [], []>} : vector<32x36xbf16>, vector<36x256xbf16>, vector<32x256xf32> -> vector<32x256xf32>
    %c0_4 = arith.constant 0 : index
    %c0_5 = arith.constant 0 : index
    %4 = vector.load %arg5[%c0_4, %c0_5] : memref<32x1xf32, #tpu.memory_space<vmem>>, vector<32x1xf32>
    %5 = vector.broadcast %4 : vector<32x1xf32> to vector<32x256xf32>
    %6 = arith.addf %3, %5 : vector<32x256xf32>
    %c0_6 = arith.constant 0 : index
    %c0_7 = arith.constant 0 : index
    %7 = vector.load %arg6[%c0_6, %c0_7] : memref<24x8xbf16, #tpu.memory_space<vmem>>, vector<24x8xbf16>
    %c0_8 = arith.constant 0 : index
    %c0_9 = arith.constant 0 : index
    %c0_10 = arith.constant 0 : index
    %8 = vector.load %arg3[%c0_8, %c0_9, %c0_10] : memref<1x8x256xbf16, #tpu.memory_space<vmem>>, vector<1x8x256xbf16>
    %9 = vector.shape_cast %8 : vector<1x8x256xbf16> to vector<8x256xbf16>
    %cst_11 = arith.constant dense<0.000000e+00> : vector<24x256xf32>
    %10 = tpu.matmul %7, %9, %cst_11 {dimension_numbers = #tpu.dot_dimension_numbers<[1], [0], [0], [1], [0, 0, 1, 1], [], []>} : vector<24x8xbf16>, vector<8x256xbf16>, vector<24x256xf32> -> vector<24x256xf32>
    %c0_12 = arith.constant 0 : index
    %c0_13 = arith.constant 0 : index
    %11 = vector.load %arg7[%c0_12, %c0_13] : memref<24x1xf32, #tpu.memory_space<vmem>>, vector<24x1xf32>
    %12 = vector.broadcast %11 : vector<24x1xf32> to vector<24x256xf32>
    %13 = arith.addf %10, %12 : vector<24x256xf32>
    %cst_14 = arith.constant 0.000000e+00 : f32
    %14 = vector.broadcast %cst_14 : f32 to vector<24x256xf32>
    %15 = arith.maximumf %13, %14 : vector<24x256xf32>
    %c0_15 = arith.constant 0 : index
    %c0_16 = arith.constant 0 : index
    %16 = vector.load %arg8[%c0_15, %c0_16] : memref<24x24xbf16, #tpu.memory_space<vmem>>, vector<24x24xbf16>
    %17 = arith.truncf %15 : vector<24x256xf32> to vector<24x256xbf16>
    %cst_17 = arith.constant dense<0.000000e+00> : vector<24x256xf32>
    %18 = tpu.matmul %16, %17, %cst_17 {dimension_numbers = #tpu.dot_dimension_numbers<[1], [0], [0], [1], [0, 0, 1, 1], [], []>} : vector<24x24xbf16>, vector<24x256xbf16>, vector<24x256xf32> -> vector<24x256xf32>
    %c0_18 = arith.constant 0 : index
    %c0_19 = arith.constant 0 : index
    %19 = vector.load %arg9[%c0_18, %c0_19] : memref<24x1xf32, #tpu.memory_space<vmem>>, vector<24x1xf32>
    %20 = vector.broadcast %19 : vector<24x1xf32> to vector<24x256xf32>
    %21 = arith.addf %18, %20 : vector<24x256xf32>
    %22 = arith.negf %21 : vector<24x256xf32>
    %23 = math.exp %22 : vector<24x256xf32>
    %cst_20 = arith.constant 1.000000e+00 : f32
    %24 = vector.broadcast %cst_20 : f32 to vector<24x256xf32>
    %25 = arith.addf %24, %23 : vector<24x256xf32>
    %26 = arith.divf %24, %25 : vector<24x256xf32>
    %27 = vector.extract_strided_slice %6 {offsets = [0, 0], sizes = [8, 256], strides = [1, 1]} : vector<32x256xf32> to vector<8x256xf32>
    %28 = vector.extract_strided_slice %26 {offsets = [0, 0], sizes = [8, 256], strides = [1, 1]} : vector<24x256xf32> to vector<8x256xf32>
    %29 = vector.extract_strided_slice %6 {offsets = [8, 0], sizes = [8, 256], strides = [1, 1]} : vector<32x256xf32> to vector<8x256xf32>
    %30 = arith.mulf %28, %29 : vector<8x256xf32>
    %31 = arith.addf %27, %30 : vector<8x256xf32>
    %32 = vector.extract_strided_slice %26 {offsets = [8, 0], sizes = [8, 256], strides = [1, 1]} : vector<24x256xf32> to vector<8x256xf32>
    %33 = vector.extract_strided_slice %6 {offsets = [16, 0], sizes = [8, 256], strides = [1, 1]} : vector<32x256xf32> to vector<8x256xf32>
    %34 = arith.mulf %32, %33 : vector<8x256xf32>
    %35 = arith.addf %31, %34 : vector<8x256xf32>
    %36 = vector.extract_strided_slice %26 {offsets = [16, 0], sizes = [8, 256], strides = [1, 1]} : vector<24x256xf32> to vector<8x256xf32>
    %37 = vector.extract_strided_slice %6 {offsets = [24, 0], sizes = [8, 256], strides = [1, 1]} : vector<32x256xf32> to vector<8x256xf32>
    %38 = arith.mulf %36, %37 : vector<8x256xf32>
    %39 = arith.addf %35, %38 : vector<8x256xf32>
    %c0_21 = arith.constant 0 : index
    %c0_22 = arith.constant 0 : index
    %c0_23 = arith.constant 0 : index
    %40 = vector.load %arg10[%c0_21, %c0_22, %c0_23] : memref<1x8x256xf32, #tpu.memory_space<vmem>>, vector<1x8x256xf32>
    %41 = vector.shape_cast %40 : vector<1x8x256xf32> to vector<8x256xf32>
    %42 = vector.shape_cast %39 : vector<8x256xf32> to vector<1x8x256xf32>
    tpu.vector_store %arg10[%c0_21, %c0_22, %c0_23], %42 {strides = array<i32>} : memref<1x8x256xf32, #tpu.memory_space<vmem>>, vector<1x8x256xf32>,
    return
  }
  func.func @transform_0(%arg0: i32, %arg1: i32) -> (i32, i32, i32) {
    %c0_i32 = arith.constant 0 : i32
    %c0_i32_0 = arith.constant 0 : i32
    return %arg0, %c0_i32, %arg1 : i32, i32, i32
  }
  func.func @transform_1(%arg0: i32, %arg1: i32) -> (i32, i32, i32) {
    %c0_i32 = arith.constant 0 : i32
    %c0_i32_0 = arith.constant 0 : i32
    return %arg0, %c0_i32, %arg1 : i32, i32, i32
  }
  func.func @transform_2(%arg0: i32, %arg1: i32) -> (i32, i32) {
    %c0_i32 = arith.constant 0 : i32
    %c0_i32_0 = arith.constant 0 : i32
    %c0_i32_1 = arith.constant 0 : i32
    return %c0_i32, %c0_i32_0 : i32, i32
  }
  func.func @transform_3(%arg0: i32, %arg1: i32) -> (i32, i32) {
    %c0_i32 = arith.constant 0 : i32
    %c0_i32_0 = arith.constant 0 : i32
    %c0_i32_1 = arith.constant 0 : i32
    return %c0_i32, %c0_i32_0 : i32, i32
  }
  func.func @transform_4(%arg0: i32, %arg1: i32) -> (i32, i32) {
    %c0_i32 = arith.constant 0 : i32
    %c0_i32_0 = arith.constant 0 : i32
    %c0_i32_1 = arith.constant 0 : i32
    return %c0_i32, %c0_i32_0 : i32, i32
  }
  func.func @transform_5(%arg0: i32, %arg1: i32) -> (i32, i32) {
    %c0_i32 = arith.constant 0 : i32
    %c0_i32_0 = arith.constant 0 : i32
    %c0_i32_1 = arith.constant 0 : i32
    return %c0_i32, %c0_i32_0 : i32, i32
  }
  func.func @transform_6(%arg0: i32, %arg1: i32) -> (i32, i32) {
    %c0_i32 = arith.constant 0 : i32
    %c0_i32_0 = arith.constant 0 : i32
    %c0_i32_1 = arith.constant 0 : i32
    return %c0_i32, %c0_i32_0 : i32, i32
  }
  func.func @transform_7(%arg0: i32, %arg1: i32) -> (i32, i32) {
    %c0_i32 = arith.constant 0 : i32
    %c0_i32_0 = arith.constant 0 : i32
    %c0_i32_1 = arith.constant 0 : i32
    return %c0_i32, %c0_i32_0 : i32, i32
  }
  func.func @transform_8(%arg0: i32, %arg1: i32) -> (i32, i32, i32) {
    %c0_i32 = arith.constant 0 : i32
    %c0_i32_0 = arith.constant 0 : i32
    return %arg0, %c0_i32, %arg1 : i32, i32, i32
  }
}

</mosaic_0001>

<llo_original>
// kernel: tpu_custom_call.1
$region0: #{tpu_custom_call.1}
  #allocation0 [shape = 'u32[]', space=smem, size = 0x4, offset = 0x4, fixed_abs, tag = 'smem constant byte address 0x4 - core index']
  #allocation1 [shape = 'u32[144,128]{1,0:T(1,128)}', space=vmem, size = 0x12000, scoped, tag = 'internal scratch']
  %s0 = inlined_call_operand.vmem [shape: bf16[2,36,256], index: 0, kind: input, shape index: {}]
  %s1 = inlined_call_operand.vmem [shape: bf16[2,8,256], index: 1, kind: input, shape index: {}]
  %s2 = inlined_call_operand.vmem [shape: bf16[32,36], index: 2, kind: input, shape index: {}]
  %s3 = inlined_call_operand.vmem [shape: f32[32,1], index: 3, kind: input, shape index: {}]
  %s4 = inlined_call_operand.vmem [shape: bf16[24,8], index: 4, kind: input, shape index: {}]
  %s5 = inlined_call_operand.vmem [shape: f32[24,1], index: 5, kind: input, shape index: {}]
  %s6 = inlined_call_operand.vmem [shape: bf16[24,24], index: 6, kind: input, shape index: {}]
  %s7 = inlined_call_operand.vmem [shape: f32[24,1], index: 7, kind: input, shape index: {}]
  %s8 = inlined_call_operand.hbm [shape: f32[2,8,256], index: 8, kind: output, shape index: {}]
  %s9 = sld [smem:[#allocation0]]
  $region65: #{tpu_custom_call.1} parent=0
    _
  %s11 = ssub.s32 1, %s9
  %s12 = scalar_select 0, %s11, %s9
  $region1: #{tpu_custom_call.1} parent=0
    #allocation2 [shape = 'u8[16384]{0}', space=vmem, size = 0x4000, scoped, tag = 'output window, operand 0']
    #allocation3 [shape = 's32[2]{0}', space=sflag, size = 0x8, scoped, tag = 'scoped memory for tpu_custom_call.1']
    %13 = vsyncpa [#allocation3], 0
    %s14 = scalar_lea.sflag [#allocation3], 1
    %15 = vsyncpa %s14, 0
    loop: start=0, step=1, limit=4
    $region2: #{tpu_custom_call.1} parent=1 // loop_pre_header
      _
    $region3: #{tpu_custom_call.1} parent=1 // loop_header
      %s17 = sphi 0, %s21
      %p18 = scmp.ge.s32.totalorder %s17, 4
      %s24 = sphi 0, %s36
      %s25 = sphi 0, %s32
      %s26 = sphi 0, %s24
      %s27 = sphi 0, %s25
      %s28 = sphi 0, %s26
      %s29 = sphi 0, %s27
      %s41 = sphi 0, %s43
      %s44 = sphi 0, %s41
      %s45 = sphi 0, %s44
      %s61 = sphi 0, %s45
      %s69 = sphi 0, %s71
      %s72 = sphi 0, %s69
      %s73 = sphi 0, %s72
      %s89 = sphi 0, %s73
      %s93 = sphi 0, %s93
      %s95 = sphi 0, %s93
      %s96 = sphi 0, %s95
      %s110 = sphi 0, %s96
      %s114 = sphi 0, %s114
      %s116 = sphi 0, %s114
      %s117 = sphi 0, %s116
      %s131 = sphi 0, %s117
      %s135 = sphi 0, %s135
      %s137 = sphi 0, %s135
      %s138 = sphi 0, %s137
      %s152 = sphi 0, %s138
      %s156 = sphi 0, %s156
      %s158 = sphi 0, %s156
      %s159 = sphi 0, %s158
      %s173 = sphi 0, %s159
      %s177 = sphi 0, %s177
      %s179 = sphi 0, %s177
      %s180 = sphi 0, %s179
      %s194 = sphi 0, %s180
      %s198 = sphi 0, %s198
      %s200 = sphi 0, %s198
      %s201 = sphi 0, %s200
      %s215 = sphi 0, %s201
      %s223 = sphi 0, %s225
      %s226 = sphi 0, %s223
      %s227 = sphi 0, %s226
      %s243 = sphi 0, %s227
    $region4: #{tpu_custom_call.1} parent=1 // loop_header_branch
      %20 = sbr.rel (%p18) target = $region8
    $region5: #{tpu_custom_call.1} parent=1 // loop_body
      %s22 = ssub.s32 %s17, 1
      %s23 = ssub.s32 %s17, 2
      %s30 = sadd.s32 1, %s25
      %p31 = scmp.ge.s32.totalorder %s30, 1
      %s32 = scalar_select %p31, 0, %s30
      %s33 = sadd.s32 1, %s24
      %s34 = scalar_select %p31, %s33, %s24
      %p35 = scmp.ge.s32.totalorder %s34, 2
      %s36 = scalar_select %p35, 0, %s34
      %s37 = ssub.s32 %s24, %s36
      %s38 = ssub.s32 %s25, %s32
      %s39 = sor.u32 %s37, %s38
      %p40 = scmp.eq.s32.totalorder %s39, 0
      %s42 = sadd.s32 %s41, 1
      %s43 = scalar_select %p40, %s41, %s42
      %p46 = pneg %p40
      %p47 = scmp.eq.s32.totalorder %s17, 1
      %p48 = por %p46, %p47
      %p49 = scmp.ne.s32.totalorder %s41, %s44
      %p50 = scmp.eq.s32.totalorder %s17, 0
      %p51 = por %p49, %p50
      %p52 = scmp.ne.s32.totalorder %s41, %s44
      %p53 = scmp.eq.s32.totalorder %s22, 1
      %p54 = por %p52, %p53
      %p55 = scmp.ne.s32.totalorder %s44, %s45
      %p56 = scmp.eq.s32.totalorder %s22, 0
      %p57 = por %p55, %p56
      %p58 = scmp.ne.s32.totalorder %s44, %s45
      %p59 = scmp.eq.s32.totalorder %s23, 1
      %p60 = por %p58, %p59
      %p62 = scmp.ne.s32.totalorder %s45, %s61
      %p63 = scmp.eq.s32.totalorder %s23, 0
      %p64 = por %p62, %p63
      %s65 = ssub.s32 %s24, %s36
      %s66 = ssub.s32 %s25, %s32
      %s67 = sor.u32 %s65, %s66
      %p68 = scmp.eq.s32.totalorder %s67, 0
      %s70 = sadd.s32 %s69, 1
      %s71 = scalar_select %p68, %s69, %s70
      %p74 = pneg %p68
      %p75 = scmp.eq.s32.totalorder %s17, 1
      %p76 = por %p74, %p75
      %p77 = scmp.ne.s32.totalorder %s69, %s72
      %p78 = scmp.eq.s32.totalorder %s17, 0
      %p79 = por %p77, %p78
      %p80 = scmp.ne.s32.totalorder %s69, %s72
      %p81 = scmp.eq.s32.totalorder %s22, 1
      %p82 = por %p80, %p81
      %p83 = scmp.ne.s32.totalorder %s72, %s73
      %p84 = scmp.eq.s32.totalorder %s22, 0
      %p85 = por %p83, %p84
      %p86 = scmp.ne.s32.totalorder %s72, %s73
      %p87 = scmp.eq.s32.totalorder %s23, 1
      %p88 = por %p86, %p87
      %p90 = scmp.ne.s32.totalorder %s73, %s89
      %p91 = scmp.eq.s32.totalorder %s23, 0
      %p92 = por %p90, %p91
      %s94 = sadd.s32 %s93, 1
      %p97 = scmp.eq.s32.totalorder %s17, 1
      %p98 = scmp.ne.s32.totalorder %s93, %s95
      %p99 = scmp.eq.s32.totalorder %s17, 0
      %p100 = por %p98, %p99
      %p101 = scmp.ne.s32.totalorder %s93, %s95
      %p102 = scmp.eq.s32.totalorder %s22, 1
      %p103 = por %p101, %p102
      %p104 = scmp.ne.s32.totalorder %s95, %s96
      %p105 = scmp.eq.s32.totalorder %s22, 0
      %p106 = por %p104, %p105
      %p107 = scmp.ne.s32.totalorder %s95, %s96
      %p108 = scmp.eq.s32.totalorder %s23, 1
      %p109 = por %p107, %p108
      %p111 = scmp.ne.s32.totalorder %s96, %s110
      %p112 = scmp.eq.s32.totalorder %s23, 0
      %p113 = por %p111, %p112
      %s115 = sadd.s32 %s114, 1
      %p118 = scmp.eq.s32.totalorder %s17, 1
      %p119 = scmp.ne.s32.totalorder %s114, %s116
      %p120 = scmp.eq.s32.totalorder %s17, 0
      %p121 = por %p119, %p120
      %p122 = scmp.ne.s32.totalorder %s114, %s116
      %p123 = scmp.eq.s32.totalorder %s22, 1
      %p124 = por %p122, %p123
      %p125 = scmp.ne.s32.totalorder %s116, %s117
      %p126 = scmp.eq.s32.totalorder %s22, 0
      %p127 = por %p125, %p126
      %p128 = scmp.ne.s32.totalorder %s116, %s117
      %p129 = scmp.eq.s32.totalorder %s23, 1
      %p130 = por %p128, %p129
      %p132 = scmp.ne.s32.totalorder %s117, %s131
      %p133 = scmp.eq.s32.totalorder %s23, 0
      %p134 = por %p132, %p133
      %s136 = sadd.s32 %s135, 1
      %p139 = scmp.eq.s32.totalorder %s17, 1
      %p140 = scmp.ne.s32.totalorder %s135, %s137
      %p141 = scmp.eq.s32.totalorder %s17, 0
      %p142 = por %p140, %p141
      %p143 = scmp.ne.s32.totalorder %s135, %s137
      %p144 = scmp.eq.s32.totalorder %s22, 1
      %p145 = por %p143, %p144
      %p146 = scmp.ne.s32.totalorder %s137, %s138
      %p147 = scmp.eq.s32.totalorder %s22, 0
      %p148 = por %p146, %p147
      %p149 = scmp.ne.s32.totalorder %s137, %s138
      %p150 = scmp.eq.s32.totalorder %s23, 1
      %p151 = por %p149, %p150
      %p153 = scmp.ne.s32.totalorder %s138, %s152
      %p154 = scmp.eq.s32.totalorder %s23, 0
      %p155 = por %p153, %p154
      %s157 = sadd.s32 %s156, 1
      %p160 = scmp.eq.s32.totalorder %s17, 1
      %p161 = scmp.ne.s32.totalorder %s156, %s158
      %p162 = scmp.eq.s32.totalorder %s17, 0
      %p163 = por %p161, %p162
      %p164 = scmp.ne.s32.totalorder %s156, %s158
      %p165 = scmp.eq.s32.totalorder %s22, 1
      %p166 = por %p164, %p165
      %p167 = scmp.ne.s32.totalorder %s158, %s159
      %p168 = scmp.eq.s32.totalorder %s22, 0
      %p169 = por %p167, %p168
      %p170 = scmp.ne.s32.totalorder %s158, %s159
      %p171 = scmp.eq.s32.totalorder %s23, 1
      %p172 = por %p170, %p171
      %p174 = scmp.ne.s32.totalorder %s159, %s173
      %p175 = scmp.eq.s32.totalorder %s23, 0
      %p176 = por %p174, %p175
      %s178 = sadd.s32 %s177, 1
      %p181 = scmp.eq.s32.totalorder %s17, 1
      %p182 = scmp.ne.s32.totalorder %s177, %s179
      %p183 = scmp.eq.s32.totalorder %s17, 0
      %p184 = por %p182, %p183
      %p185 = scmp.ne.s32.totalorder %s177, %s179
      %p186 = scmp.eq.s32.totalorder %s22, 1
      %p187 = por %p185, %p186
      %p188 = scmp.ne.s32.totalorder %s179, %s180
      %p189 = scmp.eq.s32.totalorder %s22, 0
      %p190 = por %p188, %p189
      %p191 = scmp.ne.s32.totalorder %s179, %s180
      %p192 = scmp.eq.s32.totalorder %s23, 1
      %p193 = por %p191, %p192
      %p195 = scmp.ne.s32.totalorder %s180, %s194
      %p196 = scmp.eq.s32.totalorder %s23, 0
      %p197 = por %p195, %p196
      %s199 = sadd.s32 %s198, 1
      %p202 = scmp.eq.s32.totalorder %s17, 1
      %p203 = scmp.ne.s32.totalorder %s198, %s200
      %p204 = scmp.eq.s32.totalorder %s17, 0
      %p205 = por %p203, %p204
      %p206 = scmp.ne.s32.totalorder %s198, %s200
      %p207 = scmp.eq.s32.totalorder %s22, 1
      %p208 = por %p206, %p207
      %p209 = scmp.ne.s32.totalorder %s200, %s201
      %p210 = scmp.eq.s32.totalorder %s22, 0
      %p211 = por %p209, %p210
      %p212 = scmp.ne.s32.totalorder %s200, %s201
      %p213 = scmp.eq.s32.totalorder %s23, 1
      %p214 = por %p212, %p213
      %p216 = scmp.ne.s32.totalorder %s201, %s215
      %p217 = scmp.eq.s32.totalorder %s23, 0
      %p218 = por %p216, %p217
      %s219 = ssub.s32 %s24, %s36
      %s220 = ssub.s32 %s25, %s32
      %s221 = sor.u32 %s219, %s220
      %p222 = scmp.eq.s32.totalorder %s221, 0
      %s224 = sadd.s32 %s223, 1
      %s225 = scalar_select %p222, %s223, %s224
      %p228 = pneg %p222
      %p229 = scmp.eq.s32.totalorder %s17, 1
      %p230 = por %p228, %p229
      %p231 = scmp.ne.s32.totalorder %s223, %s226
      %p232 = scmp.eq.s32.totalorder %s17, 0
      %p233 = por %p231, %p232
      %p234 = scmp.ne.s32.totalorder %s223, %s226
      %p235 = scmp.eq.s32.totalorder %s22, 1
      %p236 = por %p234, %p235
      %p237 = scmp.ne.s32.totalorder %s226, %s227
      %p238 = scmp.eq.s32.totalorder %s22, 0
      %p239 = por %p237, %p238
      %p240 = scmp.ne.s32.totalorder %s226, %s227
      %p241 = scmp.eq.s32.totalorder %s23, 1
      %p242 = por %p240, %p241
      %p244 = scmp.ne.s32.totalorder %s227, %s243
      %p245 = scmp.eq.s32.totalorder %s23, 0
      %p246 = por %p244, %p245
      %p247 = scmp.le.s32.totalorder 1, %s17
      %p248 = scmp.lt.s32.totalorder %s17, 3
      %p249 = pnand %p247, %p248
      %p250 = pneg %p249
      // Predicated region
      $region9: #{tpu_custom_call.1} parent=5 // pred_check
        _
      $region10: #{tpu_custom_call.1} parent=5 // pred_check_branch
        %252 = sbr.rel (%p249) target = $region12
      $region11: #{tpu_custom_call.1} parent=5 // pred_region
        %s253 = ssub.s32 %s17, 1
        // Predicated region
        $region13: #{tpu_custom_call.1} parent=11 // pred_check
          %p254 = pneg %p106
        $region14: #{tpu_custom_call.1} parent=11 // pred_check_branch
          %256 = sbr.rel (%p254) target = $region16
        $region15: #{tpu_custom_call.1} parent=11 // pred_region
          _
        $region16: #{tpu_custom_call.1} parent=11 // pred_fallthru
          _
        // Predicated region
        $region17: #{tpu_custom_call.1} parent=11 // pred_check
          %p257 = pneg %p127
        $region18: #{tpu_custom_call.1} parent=11 // pred_check_branch
          %259 = sbr.rel (%p257) target = $region20
        $region19: #{tpu_custom_call.1} parent=11 // pred_region
          _
        $region20: #{tpu_custom_call.1} parent=11 // pred_fallthru
          _
        // Predicated region
        $region21: #{tpu_custom_call.1} parent=11 // pred_check
          %p260 = pneg %p148
        $region22: #{tpu_custom_call.1} parent=11 // pred_check_branch
          %262 = sbr.rel (%p260) target = $region24
        $region23: #{tpu_custom_call.1} parent=11 // pred_region
          _
        $region24: #{tpu_custom_call.1} parent=11 // pred_fallthru
          _
        // Predicated region
        $region25: #{tpu_custom_call.1} parent=11 // pred_check
          %p263 = pneg %p169
        $region26: #{tpu_custom_call.1} parent=11 // pred_check_branch
          %265 = sbr.rel (%p263) target = $region28
        $region27: #{tpu_custom_call.1} parent=11 // pred_region
          _
        $region28: #{tpu_custom_call.1} parent=11 // pred_fallthru
          _
        // Predicated region
        $region29: #{tpu_custom_call.1} parent=11 // pred_check
          %p266 = pneg %p190
        $region30: #{tpu_custom_call.1} parent=11 // pred_check_branch
          %268 = sbr.rel (%p266) target = $region32
        $region31: #{tpu_custom_call.1} parent=11 // pred_region
          _
        $region32: #{tpu_custom_call.1} parent=11 // pred_fallthru
          _
        // Predicated region
        $region33: #{tpu_custom_call.1} parent=11 // pred_check
          %p269 = pneg %p211
        $region34: #{tpu_custom_call.1} parent=11 // pred_check_branch
          %271 = sbr.rel (%p269) target = $region36
        $region35: #{tpu_custom_call.1} parent=11 // pred_region
          _
        $region36: #{tpu_custom_call.1} parent=11 // pred_fallthru
          _
      $region12: #{tpu_custom_call.1} parent=5 // pred_fallthru
        _
      %p272 = scmp.lt.s32.totalorder %s17, 2
      // Predicated region
      $region37: #{tpu_custom_call.1} parent=5 // pred_check
        %p273 = pneg %p272
      $region38: #{tpu_custom_call.1} parent=5 // pred_check_branch
        %275 = sbr.rel (%p273) target = $region40
      $region39: #{tpu_custom_call.1} parent=5 // pred_region
        // Predicated region
        $region41: #{tpu_custom_call.1} parent=39 // pred_check
          %p276 = pneg %p51
        $region42: #{tpu_custom_call.1} parent=39 // pred_check_branch
          %278 = sbr.rel (%p276) target = $region44
        $region43: #{tpu_custom_call.1} parent=39 // pred_region
          %s279 = smul.u32 2, %s25
          %p280 = scmp.lt.s32.totalorder %s24, 1
          %s281 = scalar_select %p280, %s24, 1
          %p282 = scmp.lt.s32.totalorder %s279, 1
          %s283 = scalar_select %p282, %s279, 1
          %s284 = smul.addr %s281, 10
          %s285 = sadd.s32 %s283, %s284
          %s286 = smul.addr %s285, 4
          %s287 = scalar_lea.vmem %s0, %s286
          %s288 = smul.u32 2, %s25
        $region44: #{tpu_custom_call.1} parent=39 // pred_fallthru
          _
        // Predicated region
        $region45: #{tpu_custom_call.1} parent=39 // pred_check
          %p289 = pneg %p79
        $region46: #{tpu_custom_call.1} parent=39 // pred_check_branch
          %291 = sbr.rel (%p289) target = $region48
        $region47: #{tpu_custom_call.1} parent=39 // pred_region
          %s292 = smul.u32 2, %s25
          %p293 = scmp.lt.s32.totalorder %s24, 1
          %s294 = scalar_select %p293, %s24, 1
          %p295 = scmp.lt.s32.totalorder %s292, 1
          %s296 = scalar_select %p295, %s292, 1
          %s297 = smul.addr %s294, 2
          %s298 = sadd.s32 %s296, %s297
          %s299 = smul.addr %s298, 4
          %s300 = scalar_lea.vmem %s1, %s299
          %s301 = smul.u32 2, %s25
        $region48: #{tpu_custom_call.1} parent=39 // pred_fallthru
          _
      $region40: #{tpu_custom_call.1} parent=5 // pred_fallthru
        _
      %p302 = scmp.le.s32.totalorder 1, %s17
      %p303 = scmp.lt.s32.totalorder %s17, 3
      %p304 = pnand %p302, %p303
      %p305 = pneg %p304
      // Predicated region
      $region49: #{tpu_custom_call.1} parent=5 // pred_check
        _
      $region50: #{tpu_custom_call.1} parent=5 // pred_check_branch
        %307 = sbr.rel (%p304) target = $region52
      $region51: #{tpu_custom_call.1} parent=5 // pred_region
        %s308 = ssub.s32 %s17, 1
        %s309 = smul.u32 2, %s27
        %p310 = scmp.lt.s32.totalorder %s26, 1
        %s311 = scalar_select %p310, %s26, 1
        %p312 = scmp.lt.s32.totalorder %s309, 1
        %s313 = scalar_select %p312, %s309, 1
        %s314 = smul.addr %s311, 10
        %s315 = sadd.s32 %s313, %s314
        %s316 = smul.addr %s315, 4
        %s317 = scalar_lea.vmem %s0, %s316
        %p318 = pneg %p57
        %p319 = pneg %p54
        %s320 = smul.u32 2, %s27
        %p321 = scmp.lt.s32.totalorder %s26, 1
        %s322 = scalar_select %p321, %s26, 1
        %p323 = scmp.lt.s32.totalorder %s320, 1
        %s324 = scalar_select %p323, %s320, 1
        %s325 = smul.addr %s322, 2
        %s326 = sadd.s32 %s324, %s325
        %s327 = smul.addr %s326, 4
        %s328 = scalar_lea.vmem %s1, %s327
        %p329 = pneg %p85
        %p330 = pneg %p82
        %p331 = pneg %p106
        %p332 = pneg %p103
        %p333 = pneg %p127
        %p334 = pneg %p124
        %p335 = pneg %p148
        %p336 = pneg %p145
        %p337 = pneg %p169
        %p338 = pneg %p166
        %p339 = pneg %p190
        %p340 = pneg %p187
        %p341 = pneg %p211
        %p342 = pneg %p208
        %p343 = pneg %p239
        %p344 = pneg %p236
        %s345 = sand.u32 %s226, 1
        %s346 = scalar_lea.sflag [#allocation3], %s345
        %s347 = sand.u32 %s226, 1
        %s348 = smul.addr %s347, 16
        %s349 = scalar_lea.vmem [#allocation2], %s348
        %s350 = smul.u32 2, %s27
        %p351 = scmp.lt.s32.totalorder %s26, 1
        %s352 = scalar_select %p351, %s26, 1
        %p353 = scmp.lt.s32.totalorder %s350, 1
        %s354 = scalar_select %p353, %s350, 1
        %s355 = smul.addr %s352, 10
        %s356 = sadd.s32 %s354, %s355
        %s357 = smul.addr %s356, 4
        %s358 = scalar_lea.vmem %s0, %s357
        %s359 = smul.u32 2, %s27
        %s360 = smul.u32 2, %s27
        %p361 = scmp.lt.s32.totalorder %s26, 1
        %s362 = scalar_select %p361, %s26, 1
        %p363 = scmp.lt.s32.totalorder %s360, 1
        %s364 = scalar_select %p363, %s360, 1
        %s365 = smul.addr %s362, 2
        %s366 = sadd.s32 %s364, %s365
        %s367 = smul.addr %s366, 4
        %s368 = scalar_lea.vmem %s1, %s367
        %s369 = smul.u32 2, %s27
        %s370 = smul.u32 2, %s27
        %v372 = vld [vmem:[%s2] sm:$0xf]
        %v373 = vld [vmem:[%s2 + $0x4] sm:$0xf]
        %v374 = vld [vmem:[%s2 + $0x8] sm:$0xf]
        %v375 = vld [vmem:[%s2 + $0xc] sm:$0xf]
        %v376 = vld [vmem:[%s358] sm:$0xff]
        %v377 = vld [vmem:[%s358 + $0x8] sm:$0xff]
        %v378 = vld [vmem:[%s358 + $0x10] sm:$0xff]
        %v379 = vld [vmem:[%s358 + $0x18] sm:$0xff]
        %v380 = vld [vmem:[%s358 + $0x20] sm:$0x33]
        %v381 = vld [vmem:[%s3] sm:$0xff]
        %v382 = vld [vmem:[%s3 + $0x8] sm:$0xff]
        %v383 = vld [vmem:[%s3 + $0x10] sm:$0xff]
        %v384 = vld [vmem:[%s3 + $0x18] sm:$0xff]
        %386 = vset.pattern.permute.xlu0 0
        %387 = vperm.xlu0 %386, %v381
        %v388 = vpop.permute.xlu0 %387
        %391 = vset.pattern.permute.xlu0 0
        %392 = vperm.xlu0 %391, %v382
        %v393 = vpop.permute.xlu0 %392
        %396 = vset.pattern.permute.xlu0 0
        %397 = vperm.xlu0 %396, %v383
        %v398 = vpop.permute.xlu0 %397
        %401 = vset.pattern.permute.xlu0 0
        %402 = vperm.xlu0 %401, %v384
        %v403 = vpop.permute.xlu0 %402
        %v409 = vunpack.c.l.b16 %v372
        %v410 = vunpack.c.l.b16 %v373
        %v411 = vunpack.c.l.b16 %v374
        %v412 = vunpack.c.l.b16 %v375
        %v413 = vpack.c.b16 %v410, %v409
        %v414 = vpack.c.b16 %v412, %v411
        %v420 = vunpack.c.l.b16 %v376
        %v421 = vunpack.c.h.b16 %v376
        %v422 = vunpack.c.l.b16 %v377
        %v423 = vunpack.c.h.b16 %v377
        %v424 = vunpack.c.l.b16 %v378
        %v425 = vunpack.c.h.b16 %v378
        %v426 = vunpack.c.l.b16 %v379
        %v427 = vunpack.c.h.b16 %v379
        %v428 = vunpack.c.l.b16 %v380
        %v429 = vunpack.c.h.b16 %v380
        %v430 = vpack.c.b16 %v422, %v420
        %v431 = vpack.c.b16 %v423, %v421
        %v432 = vpack.c.b16 %v426, %v424
        %v433 = vpack.c.b16 %v427, %v425
        %v434 = vpack.c.b16 %v428, %v428
        %v435 = vpack.c.b16 %v429, %v429
        %vm440 = vcmask 293888
        %v442 = vsel %vm440, %v413, 0
        %v445 = vsel %vm440, %v414, 0
        %vm447 = vcmask 1041408
        %v449 = vsel %vm447, %v434, 0
        %v452 = vsel %vm447, %v435, 0
        %454 = vmatprep.subr.bf16.mxu0 %v431
        %455 = vmatpush1.bf16.msra.mxu0 %v430
        %456 = vmatprep.subr.bf16.mxu0 %v433
        %457 = vmatpush1.bf16.msra.mxu0 %v432
        %458 = vmatprep.subr.bf16.mxu0 %v452
        %459 = vmatpush1.bf16.msra.mxu0 %v449
        %460 = vmatprep.subr.bf16.mxu0 0
        %461 = vmatpush1.bf16.msra.mxu0 0
        %462 = vmatprep.subr.bf16.mxu0 0
        %463 = vmatpush1.bf16.msra.mxu0 0
        %464 = vmatprep.subr.bf16.mxu0 0
        %465 = vmatpush1.bf16.msra.mxu0 0
        %466 = vmatprep.subr.bf16.mxu0 0
        %467 = vmatpush1.bf16.msra.mxu0 0
        %468 = vmatprep.subr.bf16.mxu0 0
        %469 = vmatpush1.bf16.msra.mxu0 0
        %470 = vmatprep.subr.bf16.mxu0 0
        %471 = vmatpush1.bf16.msra.mxu0 0
        %472 = vmatprep.subr.bf16.mxu0 0
        %473 = vmatpush1.bf16.msra.mxu0 0
        %474 = vmatprep.subr.bf16.mxu0 0
        %475 = vmatpush1.bf16.msra.mxu0 0
        %476 = vmatprep.subr.bf16.mxu0 0
        %477 = vmatpush1.bf16.msra.mxu0 0
        %478 = vmatprep.subr.bf16.mxu0 0
        %479 = vmatpush1.bf16.msra.mxu0 0
        %480 = vmatprep.subr.bf16.mxu0 0
        %481 = vmatpush1.bf16.msra.mxu0 0
        %482 = vmatprep.subr.bf16.mxu0 0
        %483 = vmatpush1.bf16.msra.mxu0 0
        %484 = vmatprep.subr.bf16.mxu0 0
        %485 = vmatpush1.bf16.msra.mxu0 0
        %486 = vmatprep.mubr.bf16.mxu0 0
        %487 = vmatmul.mubr.bf16.gmra.mrb[0].mxu0 %v442
        %v488 = vpop.f32.mrb[0].mxu0
        %v489 = vadd.f32 %v388, %v488
        %v490 = vpop.f32.mrb[0].mxu0
        %v491 = vadd.f32 %v388, %v490
        %v492 = vpop.f32.mrb[0].mxu0
        %v493 = vadd.f32 %v393, %v492
        %v494 = vpop.f32.mrb[0].mxu0
        %v495 = vadd.f32 %v393, %v494
        %496 = vmatprep.mubr.bf16.mxu0 0
        %497 = vmatmul.mubr.bf16.gmra.mrb[0].mxu0 %v445
        %v498 = vpop.f32.mrb[0].mxu0
        %v499 = vadd.f32 %v398, %v498
        %v500 = vpop.f32.mrb[0].mxu0
        %v501 = vadd.f32 %v398, %v500
        %v502 = vpop.f32.mrb[0].mxu0
        %v503 = vadd.f32 %v403, %v502
        %v504 = vpop.f32.mrb[0].mxu0
        %v505 = vadd.f32 %v403, %v504
        %506 = vdwg.mxu0
        %v507 = vld [vmem:[%s4] sm:$0xf]
        %v508 = vld [vmem:[%s4 + $0x4] sm:$0xf]
        %v509 = vld [vmem:[%s4 + $0x8] sm:$0xf]
        %v510 = vld [vmem:[%s368] sm:$0xff]
        %v511 = vld [vmem:[%s5] sm:$0xff]
        %v512 = vld [vmem:[%s5 + $0x8] sm:$0xff]
        %v513 = vld [vmem:[%s5 + $0x10] sm:$0xff]
        %515 = vset.pattern.permute.xlu0 0
        %516 = vperm.xlu0 %515, %v511
        %v517 = vpop.permute.xlu0 %516
        %520 = vset.pattern.permute.xlu0 0
        %521 = vperm.xlu0 %520, %v512
        %v522 = vpop.permute.xlu0 %521
        %525 = vset.pattern.permute.xlu0 0
        %526 = vperm.xlu0 %525, %v513
        %v527 = vpop.permute.xlu0 %526
        %v532 = vunpack.c.l.b16 %v507
        %v533 = vunpack.c.l.b16 %v508
        %v534 = vunpack.c.l.b16 %v509
        %v535 = vpack.c.b16 %v533, %v532
        %v536 = vpack.c.b16 %v534, %v534
        %v538 = vunpack.c.l.b16 %v510
        %v539 = vunpack.c.h.b16 %v510
        %v540 = vpack.c.b16 %v538, %v538
        %v541 = vpack.c.b16 %v539, %v539
        %vm542 = vcmask 64512
        %v544 = vsel %vm542, %v535, 0
        %v547 = vsel %vm542, %v536, 0
        %vm549 = vcmask 1043456
        %v551 = vsel %vm549, %v540, 0
        %v554 = vsel %vm549, %v541, 0
        %556 = vmatprep.subr.bf16.mxu0 %v554
        %557 = vmatpush1.bf16.msra.mxu0 %v551
        %558 = vmatprep.subr.bf16.mxu0 0
        %559 = vmatpush1.bf16.msra.mxu0 0
        %560 = vmatprep.subr.bf16.mxu0 0
        %561 = vmatpush1.bf16.msra.mxu0 0
        %562 = vmatprep.subr.bf16.mxu0 0
        %563 = vmatpush1.bf16.msra.mxu0 0
        %564 = vmatprep.subr.bf16.mxu0 0
        %565 = vmatpush1.bf16.msra.mxu0 0
        %566 = vmatprep.subr.bf16.mxu0 0
        %567 = vmatpush1.bf16.msra.mxu0 0
        %568 = vmatprep.subr.bf16.mxu0 0
        %569 = vmatpush1.bf16.msra.mxu0 0
        %570 = vmatprep.subr.bf16.mxu0 0
        %571 = vmatpush1.bf16.msra.mxu0 0
        %572 = vmatprep.subr.bf16.mxu0 0
        %573 = vmatpush1.bf16.msra.mxu0 0
        %574 = vmatprep.subr.bf16.mxu0 0
        %575 = vmatpush1.bf16.msra.mxu0 0
        %576 = vmatprep.subr.bf16.mxu0 0
        %577 = vmatpush1.bf16.msra.mxu0 0
        %578 = vmatprep.subr.bf16.mxu0 0
        %579 = vmatpush1.bf16.msra.mxu0 0
        %580 = vmatprep.subr.bf16.mxu0 0
        %581 = vmatpush1.bf16.msra.mxu0 0
        %582 = vmatprep.subr.bf16.mxu0 0
        %583 = vmatpush1.bf16.msra.mxu0 0
        %584 = vmatprep.subr.bf16.mxu0 0
        %585 = vmatpush1.bf16.msra.mxu0 0
        %586 = vmatprep.subr.bf16.mxu0 0
        %587 = vmatpush1.bf16.msra.mxu0 0
        %588 = vmatprep.mubr.bf16.mxu0 0
        %589 = vmatmul.mubr.bf16.gmra.mrb[0].mxu0 %v544
        %v590 = vpop.f32.mrb[0].mxu0
        %v591 = vadd.f32 %v517, %v590
        %v592 = vpop.f32.mrb[0].mxu0
        %v593 = vadd.f32 %v517, %v592
        %v594 = vpop.f32.mrb[0].mxu0
        %v595 = vadd.f32 %v522, %v594
        %v596 = vpop.f32.mrb[0].mxu0
        %v597 = vadd.f32 %v522, %v596
        %598 = vmatprep.mubr.bf16.mxu0 0
        %599 = vmatmul.mubr.bf16.gmra.mrb[0].mxu0 %v547
        %v600 = vpop.f32.mrb[0].mxu0
        %v601 = vadd.f32 %v527, %v600
        %v602 = vpop.f32.mrb[0].mxu0
        %v603 = vadd.f32 %v527, %v602
        %v604 = vpop.f32.mrb[0].mxu0
        %v605 = vpop.f32.mrb[0].mxu0
        %606 = vdwg.mxu0
        %v607 = vmax.f32 %v591, 0.0
        %v608 = vmax.f32 %v593, 0.0
        %v609 = vmax.f32 %v595, 0.0
        %v610 = vmax.f32 %v597, 0.0
        %v611 = vmax.f32 %v601, 0.0
        %v612 = vmax.f32 %v603, 0.0
        %v613 = vld [vmem:[%s6] sm:$0xf]
        %v614 = vld [vmem:[%s6 + $0x4] sm:$0xf]
        %v615 = vld [vmem:[%s6 + $0x8] sm:$0xf]
        %v616 = vpack.c.bf16 %v609, %v607
        %v617 = vpack.c.bf16 %v610, %v608
        %v618 = vpack.c.bf16 %v611, %v611
        %v619 = vpack.c.bf16 %v612, %v612
        %v620 = vld [vmem:[%s7] sm:$0xff]
        %v621 = vld [vmem:[%s7 + $0x8] sm:$0xff]
        %v622 = vld [vmem:[%s7 + $0x10] sm:$0xff]
        %624 = vset.pattern.permute.xlu0 0
        %625 = vperm.xlu0 %624, %v620
        %v626 = vpop.permute.xlu0 %625
        %629 = vset.pattern.permute.xlu0 0
        %630 = vperm.xlu0 %629, %v621
        %v631 = vpop.permute.xlu0 %630
        %634 = vset.pattern.permute.xlu0 0
        %635 = vperm.xlu0 %634, %v622
        %v636 = vpop.permute.xlu0 %635
        %v641 = vunpack.c.l.b16 %v613
        %v642 = vunpack.c.l.b16 %v614
        %v643 = vunpack.c.l.b16 %v615
        %v644 = vpack.c.b16 %v642, %v641
        %v645 = vpack.c.b16 %v643, %v643
        %vm646 = vcmask 195584
        %v648 = vsel %vm646, %v644, 0
        %v651 = vsel %vm646, %v645, 0
        %v654 = vsel %vm549, %v618, 0
        %v657 = vsel %vm549, %v619, 0
        %659 = vmatprep.subr.bf16.mxu0 %v617
        %660 = vmatpush1.bf16.msra.mxu0 %v616
        %661 = vmatprep.subr.bf16.mxu0 %v657
        %662 = vmatpush1.bf16.msra.mxu0 %v654
        %663 = vmatprep.subr.bf16.mxu0 0
        %664 = vmatpush1.bf16.msra.mxu0 0
        %665 = vmatprep.subr.bf16.mxu0 0
        %666 = vmatpush1.bf16.msra.mxu0 0
        %667 = vmatprep.subr.bf16.mxu0 0
        %668 = vmatpush1.bf16.msra.mxu0 0
        %669 = vmatprep.subr.bf16.mxu0 0
        %670 = vmatpush1.bf16.msra.mxu0 0
        %671 = vmatprep.subr.bf16.mxu0 0
        %672 = vmatpush1.bf16.msra.mxu0 0
        %673 = vmatprep.subr.bf16.mxu0 0
        %674 = vmatpush1.bf16.msra.mxu0 0
        %675 = vmatprep.subr.bf16.mxu0 0
        %676 = vmatpush1.bf16.msra.mxu0 0
        %677 = vmatprep.subr.bf16.mxu0 0
        %678 = vmatpush1.bf16.msra.mxu0 0
        %679 = vmatprep.subr.bf16.mxu0 0
        %680 = vmatpush1.bf16.msra.mxu0 0
        %681 = vmatprep.subr.bf16.mxu0 0
        %682 = vmatpush1.bf16.msra.mxu0 0
        %683 = vmatprep.subr.bf16.mxu0 0
        %684 = vmatpush1.bf16.msra.mxu0 0
        %685 = vmatprep.subr.bf16.mxu0 0
        %686 = vmatpush1.bf16.msra.mxu0 0
        %687 = vmatprep.subr.bf16.mxu0 0
        %688 = vmatpush1.bf16.msra.mxu0 0
        %689 = vmatprep.subr.bf16.mxu0 0
        %690 = vmatpush1.bf16.msra.mxu0 0
        %691 = vmatprep.mubr.bf16.mxu0 0
        %692 = vmatmul.mubr.bf16.gmra.mrb[0].mxu0 %v648
        %v693 = vpop.f32.mrb[0].mxu0
        %v694 = vadd.f32 %v626, %v693
        %v695 = vpop.f32.mrb[0].mxu0
        %v696 = vadd.f32 %v626, %v695
        %v697 = vpop.f32.mrb[0].mxu0
        %v698 = vadd.f32 %v631, %v697
        %v699 = vpop.f32.mrb[0].mxu0
        %v700 = vadd.f32 %v631, %v699
        %701 = vmatprep.mubr.bf16.mxu0 0
        %702 = vmatmul.mubr.bf16.gmra.mrb[0].mxu0 %v651
        %v703 = vpop.f32.mrb[0].mxu0
        %v704 = vadd.f32 %v636, %v703
        %v705 = vpop.f32.mrb[0].mxu0
        %v706 = vadd.f32 %v636, %v705
        %v707 = vpop.f32.mrb[0].mxu0
        %v708 = vpop.f32.mrb[0].mxu0
        %709 = vdwg.mxu0
        %v710 = vxor.u32 %v694, 2147483648
        %v711 = vxor.u32 %v696, 2147483648
        %v712 = vxor.u32 %v698, 2147483648
        %v713 = vxor.u32 %v700, 2147483648
        %v714 = vxor.u32 %v704, 2147483648
        %v715 = vxor.u32 %v706, 2147483648
        %v716 = vmul.f32 %v710, 1.442695
        %v717 = vpow.pop %v716
        %v718 = vmul.f32 %v711, 1.442695
        %v719 = vpow.pop %v718
        %v720 = vmul.f32 %v712, 1.442695
        %v721 = vpow.pop %v720
        %v722 = vmul.f32 %v713, 1.442695
        %v723 = vpow.pop %v722
        %v724 = vmul.f32 %v714, 1.442695
        %v725 = vpow.pop %v724
        %v726 = vmul.f32 %v715, 1.442695
        %v727 = vpow.pop %v726
        %v728 = vadd.f32 %v717, 1.0
        %v729 = vadd.f32 %v719, 1.0
        %v730 = vadd.f32 %v721, 1.0
        %v731 = vadd.f32 %v723, 1.0
        %v732 = vadd.f32 %v725, 1.0
        %v733 = vadd.f32 %v727, 1.0
        %v734 = vrcp.pop %v728
        %v735 = vmul.f32 1.0, %v734
        %v736 = vrcp.pop %v729
        %v737 = vmul.f32 1.0, %v736
        %v738 = vrcp.pop %v730
        %v739 = vmul.f32 1.0, %v738
        %v740 = vrcp.pop %v731
        %v741 = vmul.f32 1.0, %v740
        %v742 = vrcp.pop %v732
        %v743 = vmul.f32 1.0, %v742
        %v744 = vrcp.pop %v733
        %v745 = vmul.f32 1.0, %v744
        %v746 = vmul.f32 %v735, %v493
        %v747 = vmul.f32 %v737, %v495
        %v748 = vadd.f32 %v489, %v746
        %v749 = vadd.f32 %v491, %v747
        %v750 = vmul.f32 %v739, %v499
        %v751 = vmul.f32 %v741, %v501
        %v752 = vadd.f32 %v748, %v750
        %v753 = vadd.f32 %v749, %v751
        %v754 = vmul.f32 %v743, %v503
        %v755 = vmul.f32 %v745, %v505
        %v756 = vadd.f32 %v752, %v754
        %v757 = vadd.f32 %v753, %v755
        %758 = vst [vmem:[%s349] sm:$0xff] %v756
        %759 = vst [vmem:[%s349 + $0x8] sm:$0xff] %v757
        %s760 = sand.u32 %s226, 1
        %s761 = scalar_lea.sflag [#allocation3], %s760
        %s762 = sand.u32 %s226, 1
        %s763 = smul.addr %s762, 16
        %s764 = scalar_lea.vmem [#allocation2], %s763
        // Predicated region
        $region53: #{tpu_custom_call.1} parent=51 // pred_check
          %p765 = pneg %p236
        $region54: #{tpu_custom_call.1} parent=51 // pred_check_branch
          %767 = sbr.rel (%p765) target = $region56
        $region55: #{tpu_custom_call.1} parent=51 // pred_region
          %s768 = smul.u32 2, %s27
          %s770 = ssub.s32 256, 256
          %771 = vsyncadd %s761, %s770
          %s772 = smul.addr %s26, 2
          %s773 = sadd.s32 %s768, %s772
          %s774 = smul.addr %s773, 128
          %s775 = scalar_lea.hbm %s8, %s774
          %s777 = sshll.u32 %s764, 4
          %s778 = int_to_ptr.vmem [resolvable:$true] %s777
          %780 = dma.vmem_to_hbm [thread:$0]  %s778, 256, %s775, %s761
        $region56: #{tpu_custom_call.1} parent=51 // pred_fallthru
          _
      $region52: #{tpu_custom_call.1} parent=5 // pred_fallthru
        _
      %p781 = scmp.le.s32.totalorder 2, %s17
      // Predicated region
      $region57: #{tpu_custom_call.1} parent=5 // pred_check
        %p782 = pneg %p781
      $region58: #{tpu_custom_call.1} parent=5 // pred_check_branch
        %784 = sbr.rel (%p782) target = $region60
      $region59: #{tpu_custom_call.1} parent=5 // pred_region
        %s785 = ssub.s32 %s17, 2
        // Predicated region
        $region61: #{tpu_custom_call.1} parent=59 // pred_check
          %p786 = pneg %p242
        $region62: #{tpu_custom_call.1} parent=59 // pred_check_branch
          %788 = sbr.rel (%p786) target = $region64
        $region63: #{tpu_custom_call.1} parent=59 // pred_region
          %s789 = sand.u32 %s227, 1
          %s790 = scalar_lea.sflag [#allocation3], %s789
          %s791 = sand.u32 %s227, 1
          %s792 = smul.addr %s791, 16
          %s793 = scalar_lea.vmem [#allocation2], %s792
          %794 = dma.done %s790, 256
        $region64: #{tpu_custom_call.1} parent=59 // pred_fallthru
          _
      $region60: #{tpu_custom_call.1} parent=5 // pred_fallthru
        _
    $region6: #{tpu_custom_call.1} parent=1 // loop_footer
      %s21 = sadd.s32 1, %s17
    $region7: #{tpu_custom_call.1} parent=1 // loop_footer_branch
      %16 = sbr.rel target = $region3
    $region8: #{tpu_custom_call.1} parent=1 // loop_exit
      _
    %795 = vsyncpa [#allocation3], 1
    %s796 = scalar_lea.sflag [#allocation3], 1
    %797 = vsyncpa %s796, 1

</llo_original>
